<compile_context>
chip_gen: v7x
topology: tpu7x:2x2x1
jax: 0.10.0
libtpu: 0.0.40
codegen_flags: <defaults>
</compile_context>

<pallas_src>
import numpy as np
import jax
import jax.numpy as jnp
from jax.experimental import pallas as pl
from jax.experimental.pallas import tpu as pltpu


def _round_up(x: int, m: int) -> int:
    return ((x + m - 1) // m) * m


def _pick_pack_factor(dim: int, hidden: int, half_len: int,
                      max_width: int = 512, max_pack: int = 8) -> int:
    """Largest power-of-two P (<= max_pack) s.t. every packed width <= max_width."""
    m = max(dim, hidden, half_len)
    p = 1
    while p < max_pack and 2 * p * m <= max_width:
        p *= 2
    return p


# ----------------------------- Pallas kernel ---------------------------------
def _mapping_net_kernel(x_ref,
                        w1_ref, b1_ref,
                        w2_ref, b2_ref,
                        w3_ref, b3_ref,
                        wf_ref, bf_ref,
                        wb_ref, bb_ref,
                        freq_ref, bias_ref):
    """One row-tile: 4 bf16 MXU matmuls, f32 bias + LeakyReLU(0.2), two outputs."""

    def leaky(h):
        # one vmul + one vmax instead of compare + select
        return jnp.maximum(h, 0.2 * h)

    x = x_ref[...]                                                     # bf16
    h = leaky(jnp.dot(x, w1_ref[...],
                      preferred_element_type=jnp.float32) + b1_ref[...])
    h = h.astype(jnp.bfloat16)
    h = leaky(jnp.dot(h, w2_ref[...],
                      preferred_element_type=jnp.float32) + b2_ref[...])
    h = h.astype(jnp.bfloat16)
    h = leaky(jnp.dot(h, w3_ref[...],
                      preferred_element_type=jnp.float32) + b3_ref[...])
    h = h.astype(jnp.bfloat16)

    freq_ref[...] = (jnp.dot(h, wf_ref[...],
                             preferred_element_type=jnp.float32)
                     + bf_ref[...]).astype(freq_ref.dtype)
    bias_ref[...] = (jnp.dot(h, wb_ref[...],
                             preferred_element_type=jnp.float32)
                     + bb_ref[...]).astype(bias_ref.dtype)


# ------------------------------ wrapper ---------------------------------------
def mapping_net_forward(x, params, *, dim, out_dim_per_layer, n_out_layers,
                        tile_rows: int = 8192, out_dtype=jnp.float32):
    """x: (B, ..., dim) -> (freqs, biases), each (B, ..., n_out_layers, out_dim)."""
    lead = x.shape[:-1]
    assert x.shape[-1] == dim
    n = int(np.prod(lead)) if lead else 1
    half_len = out_dim_per_layer * n_out_layers

    (w1, b1, w2, b2, w3, b3, w4, b4) = params
    hidden = w1.shape[1]

    # --- split the final layer into freq / bias column groups (PyTorch chunk order:
    #     per out-layer, first out_dim cols = freqs, next out_dim cols = biases).
    w4r = w4.reshape(hidden, n_out_layers, 2, out_dim_per_layer)
    b4r = b4.reshape(1, n_out_layers, 2, out_dim_per_layer)
    w4f = w4r[:, :, 0, :].reshape(hidden, half_len)
    w4b = w4r[:, :, 1, :].reshape(hidden, half_len)
    b4f = b4r[:, :, 0, :].reshape(1, half_len)
    b4b = b4r[:, :, 1, :].reshape(1, half_len)

    # --- lane packing: P logical rows per vreg row via block-diagonal weights.
    P = _pick_pack_factor(dim, hidden, half_len)
    eye = jnp.eye(P, dtype=jnp.float32)

    def pack_w(w):  # (in, out) -> (P*in, P*out) block-diagonal, bf16 (native MXU)
        return jnp.kron(eye, w.astype(jnp.float32)).astype(jnp.bfloat16)

    def pack_b(b):  # (1, out) -> (1, P*out), kept f32 (bias add stays f32)
        return jnp.tile(b.astype(jnp.float32), (1, P))

    pw1, pb1 = pack_w(w1), pack_b(b1)
    pw2, pb2 = pack_w(w2), pack_b(b2)
    pw3, pb3 = pack_w(w3), pack_b(b3)
    pwf, pbf = pack_w(w4f), pack_b(b4f)
    pwb, pbb = pack_w(w4b), pack_b(b4b)

    # --- stream x as bf16, packed: P consecutive rows concatenated along lanes.
    xf = x.reshape(n, dim).astype(jnp.bfloat16)
    n_p = _round_up(n, P)
    if n_p != n:
        xf = jnp.pad(xf, ((0, n_p - n), (0, 0)))
    n_packed = n_p // P
    xf = xf.reshape(n_packed, P * dim)          # contiguous reshape (no data move)

    # --- row tile over packed rows; multiple of 16 covers bf16 + f32 sublane tiling.
    tile_packed = max(16, _round_up(max(tile_rows // P, 1), 16))
    tn = min(tile_packed, _round_up(n_packed, 16))
    tn = _round_up(tn, 16)
    n_grid = _round_up(n_packed, tn)
    if n_grid != n_packed:
        xf = jnp.pad(xf, ((0, n_grid - n_packed), (0, 0)))

    grid = (n_grid // tn,)

    # advisory cost estimate
    pd, ph, phl = P * dim, P * hidden, P * half_len
    flops = 2 * n_grid * (pd * ph + 2 * ph * ph + 2 * ph * phl)
    weight_bytes = sum(int(np.prod(a.shape)) * a.dtype.itemsize
                       for a in (pw1, pb1, pw2, pb2, pw3, pb3, pwf, pbf, pwb, pbb))
    out_itemsize = jnp.dtype(out_dtype).itemsize
    bytes_accessed = n_grid * (pd * 2 + 2 * phl * out_itemsize) + weight_bytes

    x_spec = pl.BlockSpec((tn, pd), lambda i: (i, 0))
    out_spec = pl.BlockSpec((tn, phl), lambda i: (i, 0))

    def const_spec(arr):
        # same block every grid step -> stays VMEM-resident, no re-DMA
        return pl.BlockSpec(arr.shape, lambda i: (0, 0))

    out_f, out_b = pl.pallas_call(
        _mapping_net_kernel,
        out_shape=(jax.ShapeDtypeStruct((n_grid, phl), out_dtype),
                   jax.ShapeDtypeStruct((n_grid, phl), out_dtype)),
        grid=grid,
        in_specs=[x_spec,
                  const_spec(pw1), const_spec(pb1),
                  const_spec(pw2), const_spec(pb2),
                  const_spec(pw3), const_spec(pb3),
                  const_spec(pwf), const_spec(pbf),
                  const_spec(pwb), const_spec(pbb)],
        out_specs=(out_spec, out_spec),
        compiler_params=pltpu.CompilerParams(
            dimension_semantics=("parallel",)),
        cost_estimate=pl.CostEstimate(
            flops=flops, transcendentals=0, bytes_accessed=bytes_accessed),
    )(xf, pw1, pb1, pw2, pb2, pw3, pb3, pwf, pbf, pwb, pbb)

    # contiguous un-pack reshapes, then drop padded rows
    freqs = out_f.reshape(n_grid * P, half_len)[:n].reshape(
        lead + (n_out_layers, out_dim_per_layer))
    biases = out_b.reshape(n_grid * P, half_len)[:n].reshape(
        lead + (n_out_layers, out_dim_per_layer))
    return freqs, biases


# --------------------------- deterministic init -------------------------------
def init_params(key, dim, hidden_size, last_length):
    """Mimics kaiming_normal_(a=0.2, fan_in, leaky_relu) on weights,
    PyTorch default uniform bias init, and 0.25 scaling of the last weight."""
    gain = np.sqrt(2.0 / (1.0 + 0.2 ** 2))

    def linear(key, fan_in, fan_out, weight_scale=1.0):
        kw, kb = jax.random.split(key)
        std = gain / np.sqrt(fan_in)
        # stored as (in, out) so the kernel does x @ W  (== PyTorch x @ W.T)
        w = std * jax.random.normal(kw, (fan_in, fan_out), dtype=jnp.float32)
        bound = 1.0 / np.sqrt(fan_in)
        b = jax.random.uniform(kb, (1, fan_out), dtype=jnp.float32,
                               minval=-bound, maxval=bound)
        return w * weight_scale, b

    k1, k2, k3, k4 = jax.random.split(key, 4)
    w1, b1 = linear(k1, dim, hidden_size)
    w2, b2 = linear(k2, hidden_size, hidden_size)
    w3, b3 = linear(k3, hidden_size, hidden_size)
    w4, b4 = linear(k4, hidden_size, last_length, weight_scale=0.25)
    return (w1, b1, w2, b2, w3, b3, w4, b4)


# ------------------------------ reference --------------------------------------
def _ref_mlp_bf16(x, params):
    """Pure-JAX reference matching the kernel's numerics:
    bf16 matmul operands, f32 accumulation, f32 bias add + LeakyReLU."""
    w1, b1, w2, b2, w3, b3, w4, b4 = params

    def mm(a, w):
        return jnp.dot(a.astype(jnp.bfloat16).astype(jnp.float32),
                       w.astype(jnp.bfloat16).astype(jnp.float32),
                       preferred_element_type=jnp.float32)

    def leaky(h):
        return jnp.where(h >= 0, h, 0.2 * h)

    h = leaky(mm(x, w1) + b1)
    h = leaky(mm(h, w2) + b2)
    h = leaky(mm(h, w3) + b3)
    return mm(h, w4) + b4


# ----------------------------------- main -------------------------------------
if __name__ == "__main__":
    dim = 32
    hidden_size = 32
    out_dim_per_layer = 16
    n_out_layers = 2
    last_length = out_dim_per_layer * 2 * n_out_layers  # 64

    key = jax.random.PRNGKey(0)
    kx, kp, kx2 = jax.random.split(key, 3)

    params = init_params(kp, dim, hidden_size, last_length)

    def check(x, tile_rows):
        freqs, biases = mapping_net_forward(
            x, params,
            dim=dim, out_dim_per_layer=out_dim_per_layer,
            n_out_layers=n_out_layers, tile_rows=tile_rows)
        jax.block_until_ready((freqs, biases))

        out_ref = _ref_mlp_bf16(x.reshape(-1, dim), params).reshape(
            x.shape[:-1] + (n_out_layers, 2 * out_dim_per_layer))
        np.testing.assert_allclose(np.asarray(freqs),
                                   np.asarray(out_ref[..., :out_dim_per_layer]),
                                   rtol=2e-3, atol=2e-3)
        np.testing.assert_allclose(np.asarray(biases),
                                   np.asarray(out_ref[..., out_dim_per_layer:]),
                                   rtol=2e-3, atol=2e-3)
        assert freqs.shape == x.shape[:-1] + (n_out_layers, out_dim_per_layer)
        assert biases.shape == x.shape[:-1] + (n_out_layers, out_dim_per_layer)

    # 1) tiny case: single grid step (N=16 logical rows -> 2 packed rows)
    x = jax.random.normal(kx, (2, 8, dim), dtype=jnp.float32)
    check(x, tile_rows=8192)

    # 2) multi-tile case with a remainder tile (N=1200 -> 150 packed rows,
    #    packed tile 32 -> grid=(5,)), exercises grid + padding path
    x2 = jax.random.normal(kx2, (4, 300, dim), dtype=jnp.float32)
    check(x2, tile_rows=256)

    print("KERNEL_OK")
</pallas_src>

<mosaic_0001>
module attributes {stable_mosaic.version = 11 : i64} {
  func.func @_mapping_net_kernel(%arg0: i32, %arg1: memref<16x256xbf16, #tpu.memory_space<vmem>>, %arg2: memref<256x256xbf16, #tpu.memory_space<vmem>>, %arg3: memref<1x256xf32, #tpu.memory_space<vmem>>, %arg4: memref<256x256xbf16, #tpu.memory_space<vmem>>, %arg5: memref<1x256xf32, #tpu.memory_space<vmem>>, %arg6: memref<256x256xbf16, #tpu.memory_space<vmem>>, %arg7: memref<1x256xf32, #tpu.memory_space<vmem>>, %arg8: memref<256x256xbf16, #tpu.memory_space<vmem>>, %arg9: memref<1x256xf32, #tpu.memory_space<vmem>>, %arg10: memref<256x256xbf16, #tpu.memory_space<vmem>>, %arg11: memref<1x256xf32, #tpu.memory_space<vmem>>, %arg12: memref<16x256xf32, #tpu.memory_space<vmem>>, %arg13: memref<16x256xf32, #tpu.memory_space<vmem>>) attributes {dimension_semantics = [#tpu.dimension_semantics<parallel>], iteration_bounds = array<i64: 1>, scalar_prefetch = 0 : i64, scratch_operands = 0 : i64, tpu.core_type = #tpu.core_type<tc>, window_params = [{transform_indices = @transform_0, window_bounds = array<i64: 16, 256>}, {pipeline_mode = #tpu.pipeline_mode<synchronous>, transform_indices = @transform_1, window_bounds = array<i64: 256, 256>}, {pipeline_mode = #tpu.pipeline_mode<synchronous>, transform_indices = @transform_2, window_bounds = array<i64: 1, 256>}, {pipeline_mode = #tpu.pipeline_mode<synchronous>, transform_indices = @transform_3, window_bounds = array<i64: 256, 256>}, {pipeline_mode = #tpu.pipeline_mode<synchronous>, transform_indices = @transform_4, window_bounds = array<i64: 1, 256>}, {pipeline_mode = #tpu.pipeline_mode<synchronous>, transform_indices = @transform_5, window_bounds = array<i64: 256, 256>}, {pipeline_mode = #tpu.pipeline_mode<synchronous>, transform_indices = @transform_6, window_bounds = array<i64: 1, 256>}, {pipeline_mode = #tpu.pipeline_mode<synchronous>, transform_indices = @transform_7, window_bounds = array<i64: 256, 256>}, {pipeline_mode = #tpu.pipeline_mode<synchronous>, transform_indices = @transform_8, window_bounds = array<i64: 1, 256>}, {pipeline_mode = #tpu.pipeline_mode<synchronous>, transform_indices = @transform_9, window_bounds = array<i64: 256, 256>}, {pipeline_mode = #tpu.pipeline_mode<synchronous>, transform_indices = @transform_10, window_bounds = array<i64: 1, 256>}, {transform_indices = @transform_11, window_bounds = array<i64: 16, 256>}, {transform_indices = @transform_12, window_bounds = array<i64: 16, 256>}]} {
    %c0 = arith.constant 0 : index
    %c0_0 = arith.constant 0 : index
    %0 = vector.load %arg1[%c0, %c0_0] : memref<16x256xbf16, #tpu.memory_space<vmem>>, vector<16x256xbf16>
    %c0_1 = arith.constant 0 : index
    %c0_2 = arith.constant 0 : index
    %1 = vector.load %arg2[%c0_1, %c0_2] : memref<256x256xbf16, #tpu.memory_space<vmem>>, vector<256x256xbf16>
    %cst = arith.constant dense<0.000000e+00> : vector<16x256xf32>
    %2 = tpu.matmul %0, %1, %cst {dimension_numbers = #tpu.dot_dimension_numbers<[1], [0], [0], [1], [0, 0, 1, 1], [], []>} : vector<16x256xbf16>, vector<256x256xbf16>, vector<16x256xf32> -> vector<16x256xf32>
    %c0_3 = arith.constant 0 : index
    %c0_4 = arith.constant 0 : index
    %3 = vector.load %arg3[%c0_3, %c0_4] : memref<1x256xf32, #tpu.memory_space<vmem>>, vector<1x256xf32>
    %4 = vector.broadcast %3 : vector<1x256xf32> to vector<16x256xf32>
    %5 = arith.addf %2, %4 : vector<16x256xf32>
    %cst_5 = arith.constant 2.000000e-01 : f32
    %6 = vector.broadcast %cst_5 : f32 to vector<16x256xf32>
    %7 = arith.mulf %6, %5 : vector<16x256xf32>
    %8 = arith.maximumf %5, %7 : vector<16x256xf32>
    %9 = arith.truncf %8 : vector<16x256xf32> to vector<16x256xbf16>
    %c0_6 = arith.constant 0 : index
    %c0_7 = arith.constant 0 : index
    %10 = vector.load %arg4[%c0_6, %c0_7] : memref<256x256xbf16, #tpu.memory_space<vmem>>, vector<256x256xbf16>
    %cst_8 = arith.constant dense<0.000000e+00> : vector<16x256xf32>
    %11 = tpu.matmul %9, %10, %cst_8 {dimension_numbers = #tpu.dot_dimension_numbers<[1], [0], [0], [1], [0, 0, 1, 1], [], []>} : vector<16x256xbf16>, vector<256x256xbf16>, vector<16x256xf32> -> vector<16x256xf32>
    %c0_9 = arith.constant 0 : index
    %c0_10 = arith.constant 0 : index
    %12 = vector.load %arg5[%c0_9, %c0_10] : memref<1x256xf32, #tpu.memory_space<vmem>>, vector<1x256xf32>
    %13 = vector.broadcast %12 : vector<1x256xf32> to vector<16x256xf32>
    %14 = arith.addf %11, %13 : vector<16x256xf32>
    %cst_11 = arith.constant 2.000000e-01 : f32
    %15 = vector.broadcast %cst_11 : f32 to vector<16x256xf32>
    %16 = arith.mulf %15, %14 : vector<16x256xf32>
    %17 = arith.maximumf %14, %16 : vector<16x256xf32>
    %18 = arith.truncf %17 : vector<16x256xf32> to vector<16x256xbf16>
    %c0_12 = arith.constant 0 : index
    %c0_13 = arith.constant 0 : index
    %19 = vector.load %arg6[%c0_12, %c0_13] : memref<256x256xbf16, #tpu.memory_space<vmem>>, vector<256x256xbf16>
    %cst_14 = arith.constant dense<0.000000e+00> : vector<16x256xf32>
    %20 = tpu.matmul %18, %19, %cst_14 {dimension_numbers = #tpu.dot_dimension_numbers<[1], [0], [0], [1], [0, 0, 1, 1], [], []>} : vector<16x256xbf16>, vector<256x256xbf16>, vector<16x256xf32> -> vector<16x256xf32>
    %c0_15 = arith.constant 0 : index
    %c0_16 = arith.constant 0 : index
    %21 = vector.load %arg7[%c0_15, %c0_16] : memref<1x256xf32, #tpu.memory_space<vmem>>, vector<1x256xf32>
    %22 = vector.broadcast %21 : vector<1x256xf32> to vector<16x256xf32>
    %23 = arith.addf %20, %22 : vector<16x256xf32>
    %cst_17 = arith.constant 2.000000e-01 : f32
    %24 = vector.broadcast %cst_17 : f32 to vector<16x256xf32>
    %25 = arith.mulf %24, %23 : vector<16x256xf32>
    %26 = arith.maximumf %23, %25 : vector<16x256xf32>
    %27 = arith.truncf %26 : vector<16x256xf32> to vector<16x256xbf16>
    %c0_18 = arith.constant 0 : index
    %c0_19 = arith.constant 0 : index
    %28 = vector.load %arg8[%c0_18, %c0_19] : memref<256x256xbf16, #tpu.memory_space<vmem>>, vector<256x256xbf16>
    %cst_20 = arith.constant dense<0.000000e+00> : vector<16x256xf32>
    %29 = tpu.matmul %27, %28, %cst_20 {dimension_numbers = #tpu.dot_dimension_numbers<[1], [0], [0], [1], [0, 0, 1, 1], [], []>} : vector<16x256xbf16>, vector<256x256xbf16>, vector<16x256xf32> -> vector<16x256xf32>
    %c0_21 = arith.constant 0 : index
    %c0_22 = arith.constant 0 : index
    %30 = vector.load %arg9[%c0_21, %c0_22] : memref<1x256xf32, #tpu.memory_space<vmem>>, vector<1x256xf32>
    %31 = vector.broadcast %30 : vector<1x256xf32> to vector<16x256xf32>
    %32 = arith.addf %29, %31 : vector<16x256xf32>
    %c0_23 = arith.constant 0 : index
    %c0_24 = arith.constant 0 : index
    %33 = vector.load %arg12[%c0_23, %c0_24] : memref<16x256xf32, #tpu.memory_space<vmem>>, vector<16x256xf32>
    tpu.vector_store %arg12[%c0_23, %c0_24], %32 {strides = array<i32>} : memref<16x256xf32, #tpu.memory_space<vmem>>, vector<16x256xf32>,
    %c0_25 = arith.constant 0 : index
    %c0_26 = arith.constant 0 : index
    %34 = vector.load %arg10[%c0_25, %c0_26] : memref<256x256xbf16, #tpu.memory_space<vmem>>, vector<256x256xbf16>
    %cst_27 = arith.constant dense<0.000000e+00> : vector<16x256xf32>
    %35 = tpu.matmul %27, %34, %cst_27 {dimension_numbers = #tpu.dot_dimension_numbers<[1], [0], [0], [1], [0, 0, 1, 1], [], []>} : vector<16x256xbf16>, vector<256x256xbf16>, vector<16x256xf32> -> vector<16x256xf32>
    %c0_28 = arith.constant 0 : index
    %c0_29 = arith.constant 0 : index
    %36 = vector.load %arg11[%c0_28, %c0_29] : memref<1x256xf32, #tpu.memory_space<vmem>>, vector<1x256xf32>
    %37 = vector.broadcast %36 : vector<1x256xf32> to vector<16x256xf32>
    %38 = arith.addf %35, %37 : vector<16x256xf32>
    %c0_30 = arith.constant 0 : index
    %c0_31 = arith.constant 0 : index
    %39 = vector.load %arg13[%c0_30, %c0_31] : memref<16x256xf32, #tpu.memory_space<vmem>>, vector<16x256xf32>
    tpu.vector_store %arg13[%c0_30, %c0_31], %38 {strides = array<i32>} : memref<16x256xf32, #tpu.memory_space<vmem>>, vector<16x256xf32>,
    return
  }
  func.func @transform_0(%arg0: i32) -> (i32, i32) {
    %c0_i32 = arith.constant 0 : i32
    %c0_i32_0 = arith.constant 0 : i32
    return %arg0, %c0_i32 : i32, i32
  }
  func.func @transform_1(%arg0: i32) -> (i32, i32) {
    %c0_i32 = arith.constant 0 : i32
    %c0_i32_0 = arith.constant 0 : i32
    %c0_i32_1 = arith.constant 0 : i32
    return %c0_i32, %c0_i32_0 : i32, i32
  }
  func.func @transform_2(%arg0: i32) -> (i32, i32) {
    %c0_i32 = arith.constant 0 : i32
    %c0_i32_0 = arith.constant 0 : i32
    %c0_i32_1 = arith.constant 0 : i32
    return %c0_i32, %c0_i32_0 : i32, i32
  }
  func.func @transform_3(%arg0: i32) -> (i32, i32) {
    %c0_i32 = arith.constant 0 : i32
    %c0_i32_0 = arith.constant 0 : i32
    %c0_i32_1 = arith.constant 0 : i32
    return %c0_i32, %c0_i32_0 : i32, i32
  }
  func.func @transform_4(%arg0: i32) -> (i32, i32) {
    %c0_i32 = arith.constant 0 : i32
    %c0_i32_0 = arith.constant 0 : i32
    %c0_i32_1 = arith.constant 0 : i32
    return %c0_i32, %c0_i32_0 : i32, i32
  }
  func.func @transform_5(%arg0: i32) -> (i32, i32) {
    %c0_i32 = arith.constant 0 : i32
    %c0_i32_0 = arith.constant 0 : i32
    %c0_i32_1 = arith.constant 0 : i32
    return %c0_i32, %c0_i32_0 : i32, i32
  }
  func.func @transform_6(%arg0: i32) -> (i32, i32) {
    %c0_i32 = arith.constant 0 : i32
    %c0_i32_0 = arith.constant 0 : i32
    %c0_i32_1 = arith.constant 0 : i32
    return %c0_i32, %c0_i32_0 : i32, i32
  }
  func.func @transform_7(%arg0: i32) -> (i32, i32) {
    %c0_i32 = arith.constant 0 : i32
    %c0_i32_0 = arith.constant 0 : i32
    %c0_i32_1 = arith.constant 0 : i32
    return %c0_i32, %c0_i32_0 : i32, i32
  }
  func.func @transform_8(%arg0: i32) -> (i32, i32) {
    %c0_i32 = arith.constant 0 : i32
    %c0_i32_0 = arith.constant 0 : i32
    %c0_i32_1 = arith.constant 0 : i32
    return %c0_i32, %c0_i32_0 : i32, i32
  }
  func.func @transform_9(%arg0: i32) -> (i32, i32) {
    %c0_i32 = arith.constant 0 : i32
    %c0_i32_0 = arith.constant 0 : i32
    %c0_i32_1 = arith.constant 0 : i32
    return %c0_i32, %c0_i32_0 : i32, i32
  }
  func.func @transform_10(%arg0: i32) -> (i32, i32) {
    %c0_i32 = arith.constant 0 : i32
    %c0_i32_0 = arith.constant 0 : i32
    %c0_i32_1 = arith.constant 0 : i32
    return %c0_i32, %c0_i32_0 : i32, i32
  }
  func.func @transform_11(%arg0: i32) -> (i32, i32) {
    %c0_i32 = arith.constant 0 : i32
    %c0_i32_0 = arith.constant 0 : i32
    return %arg0, %c0_i32 : i32, i32
  }
  func.func @transform_12(%arg0: i32) -> (i32, i32) {
    %c0_i32 = arith.constant 0 : i32
    %c0_i32_0 = arith.constant 0 : i32
    return %arg0, %c0_i32 : i32, i32
  }
}

</mosaic_0001>

<llo_original>
// kernel: tpu_custom_call.1
$region0: #{tpu_custom_call.1}
  #allocation0 [shape = 'u32[]', space=smem, size = 0x4, offset = 0x4, fixed_abs, tag = 'smem constant byte address 0x4 - core index']
  #allocation1 [shape = 'u32[144,128]{1,0:T(1,128)}', space=vmem, size = 0x12000, scoped, tag = 'internal scratch']
  %s0 = inlined_call_operand.hbm [shape: bf16[16,256], index: 0, kind: input, shape index: {}]
  %s1 = inlined_call_operand.hbm [shape: bf16[256,256], index: 1, kind: input, shape index: {}]
  %s2 = inlined_call_operand.vmem [shape: f32[1,256], index: 2, kind: input, shape index: {}]
  %s3 = inlined_call_operand.hbm [shape: bf16[256,256], index: 3, kind: input, shape index: {}]
  %s4 = inlined_call_operand.vmem [shape: f32[1,256], index: 4, kind: input, shape index: {}]
  %s5 = inlined_call_operand.hbm [shape: bf16[256,256], index: 5, kind: input, shape index: {}]
  %s6 = inlined_call_operand.vmem [shape: f32[1,256], index: 6, kind: input, shape index: {}]
  %s7 = inlined_call_operand.hbm [shape: bf16[256,256], index: 7, kind: input, shape index: {}]
  %s8 = inlined_call_operand.vmem [shape: f32[1,256], index: 8, kind: input, shape index: {}]
  %s9 = inlined_call_operand.hbm [shape: bf16[256,256], index: 9, kind: input, shape index: {}]
  %s10 = inlined_call_operand.vmem [shape: f32[1,256], index: 10, kind: input, shape index: {}]
  %s11 = inlined_call_operand.hbm [shape: f32[16,256], index: 11, kind: output, shape index: {0}]
  %s12 = inlined_call_operand.hbm [shape: f32[16,256], index: 12, kind: output, shape index: {1}]
  %13 = xla_tuple %s11, %s12
  %s14 = sld [smem:[#allocation0]]
  $region86: #{tpu_custom_call.1} parent=0
    _
  %s16 = ssub.s32 1, %s14
  %s17 = scalar_select 0, %s16, %s14
  $region1: #{tpu_custom_call.1} parent=0
    #allocation2 [shape = 'u8[8192]{0}', space=vmem, size = 0x2000, scoped, tag = 'input window, operand 0, single buffered']
    #allocation3 [shape = 's32[1]{0}', space=sflag, size = 0x4, scoped, tag = 'scoped memory for tpu_custom_call.1']
    #allocation4 [shape = 's32[1]{0}', space=sflag, size = 0x4, scoped, tag = 'scoped memory for tpu_custom_call.1']
    #allocation5 [shape = 'u8[131072]{0}', space=vmem, size = 0x20000, scoped, tag = 'input window, operand 1, single buffered']
    #allocation6 [shape = 's32[1]{0}', space=sflag, size = 0x4, scoped, tag = 'scoped memory for tpu_custom_call.1']
    #allocation7 [shape = 'u8[131072]{0}', space=vmem, size = 0x20000, scoped, tag = 'input window, operand 3, single buffered']
    #allocation8 [shape = 'u8[131072]{0}', space=vmem, size = 0x20000, scoped, tag = 'input window, operand 5, single buffered']
    #allocation9 [shape = 's32[1]{0}', space=sflag, size = 0x4, scoped, tag = 'scoped memory for tpu_custom_call.1']
    #allocation10 [shape = 'u8[131072]{0}', space=vmem, size = 0x20000, scoped, tag = 'input window, operand 7, single buffered']
    #allocation11 [shape = 'u8[131072]{0}', space=vmem, size = 0x20000, scoped, tag = 'input window, operand 9, single buffered']
    #allocation12 [shape = 's32[1]{0}', space=sflag, size = 0x4, scoped, tag = 'scoped memory for tpu_custom_call.1']
    #allocation13 [shape = 'u8[16384]{0}', space=vmem, size = 0x4000, scoped, tag = 'output window, operand 0, single buffered']
    #allocation14 [shape = 'u8[16384]{0}', space=vmem, size = 0x4000, scoped, tag = 'output window, operand 1, single buffered']
    #allocation15 [shape = 's32[1]{0}', space=sflag, size = 0x4, scoped, tag = 'scoped memory for tpu_custom_call.1']
    %18 = vsyncpa [#allocation3], 0
    %19 = vsyncpa [#allocation6], 0
    %20 = vsyncpa [#allocation9], 0
    %21 = vsyncpa [#allocation12], 0
    %22 = vsyncpa [#allocation4], 0
    %23 = vsyncpa [#allocation15], 0
    // Predicated region
    $region2: #{tpu_custom_call.1} parent=1 // pred_check
      _
    $region3: #{tpu_custom_call.1} parent=1 // pred_check_branch
      %25 = sbr.rel (0) target = $region5
    $region4: #{tpu_custom_call.1} parent=1 // pred_region
      %s27 = ssub.s32 256, 256
      %28 = vsyncadd [#allocation3], %s27
      %s29 = sshll.u32 [#allocation2], 4
      %s30 = int_to_ptr.vmem [resolvable:$true] %s29
      %35 = dma.hbm_to_vmem [thread:$0]  %s0, 256, %s30, [#allocation3], 128, 128, 8
    $region5: #{tpu_custom_call.1} parent=1 // pred_fallthru
      _
    // Predicated region
    $region6: #{tpu_custom_call.1} parent=1 // pred_check
      _
    $region7: #{tpu_custom_call.1} parent=1 // pred_check_branch
      %37 = sbr.rel (0) target = $region9
    $region8: #{tpu_custom_call.1} parent=1 // pred_region
      %s39 = ssub.s32 4096, 4096
      %40 = vsyncadd [#allocation6], %s39
      %s41 = sshll.u32 [#allocation5], 4
      %s42 = int_to_ptr.vmem [resolvable:$true] %s41
      %47 = dma.hbm_to_vmem [thread:$0]  %s1, 4096, %s42, [#allocation6], 128, 128, 8
    $region9: #{tpu_custom_call.1} parent=1 // pred_fallthru
      _
    // Predicated region
    $region10: #{tpu_custom_call.1} parent=1 // pred_check
      _
    $region11: #{tpu_custom_call.1} parent=1 // pred_check_branch
      %49 = sbr.rel (0) target = $region13
    $region12: #{tpu_custom_call.1} parent=1 // pred_region
      _
    $region13: #{tpu_custom_call.1} parent=1 // pred_fallthru
      _
    // Predicated region
    $region14: #{tpu_custom_call.1} parent=1 // pred_check
      _
    $region15: #{tpu_custom_call.1} parent=1 // pred_check_branch
      %51 = sbr.rel (0) target = $region17
    $region16: #{tpu_custom_call.1} parent=1 // pred_region
      %s53 = ssub.s32 4096, 4096
      %54 = vsyncadd [#allocation6], %s53
      %s55 = sshll.u32 [#allocation7], 4
      %s56 = int_to_ptr.vmem [resolvable:$true] %s55
      %61 = dma.hbm_to_vmem [thread:$0]  %s3, 4096, %s56, [#allocation6], 128, 128, 8
    $region17: #{tpu_custom_call.1} parent=1 // pred_fallthru
      _
    // Predicated region
    $region18: #{tpu_custom_call.1} parent=1 // pred_check
      _
    $region19: #{tpu_custom_call.1} parent=1 // pred_check_branch
      %63 = sbr.rel (0) target = $region21
    $region20: #{tpu_custom_call.1} parent=1 // pred_region
      _
    $region21: #{tpu_custom_call.1} parent=1 // pred_fallthru
      _
    // Predicated region
    $region22: #{tpu_custom_call.1} parent=1 // pred_check
      _
    $region23: #{tpu_custom_call.1} parent=1 // pred_check_branch
      %65 = sbr.rel (0) target = $region25
    $region24: #{tpu_custom_call.1} parent=1 // pred_region
      %s67 = ssub.s32 4096, 4096
      %68 = vsyncadd [#allocation9], %s67
      %s69 = sshll.u32 [#allocation8], 4
      %s70 = int_to_ptr.vmem [resolvable:$true] %s69
      %75 = dma.hbm_to_vmem [thread:$0]  %s5, 4096, %s70, [#allocation9], 128, 128, 8
    $region25: #{tpu_custom_call.1} parent=1 // pred_fallthru
      _
    // Predicated region
    $region26: #{tpu_custom_call.1} parent=1 // pred_check
      _
    $region27: #{tpu_custom_call.1} parent=1 // pred_check_branch
      %77 = sbr.rel (0) target = $region29
    $region28: #{tpu_custom_call.1} parent=1 // pred_region
      _
    $region29: #{tpu_custom_call.1} parent=1 // pred_fallthru
      _
    // Predicated region
    $region30: #{tpu_custom_call.1} parent=1 // pred_check
      _
    $region31: #{tpu_custom_call.1} parent=1 // pred_check_branch
      %79 = sbr.rel (0) target = $region33
    $region32: #{tpu_custom_call.1} parent=1 // pred_region
      %s81 = ssub.s32 4096, 4096
      %82 = vsyncadd [#allocation9], %s81
      %s83 = sshll.u32 [#allocation10], 4
      %s84 = int_to_ptr.vmem [resolvable:$true] %s83
      %89 = dma.hbm_to_vmem [thread:$0]  %s7, 4096, %s84, [#allocation9], 128, 128, 8
    $region33: #{tpu_custom_call.1} parent=1 // pred_fallthru
      _
    // Predicated region
    $region34: #{tpu_custom_call.1} parent=1 // pred_check
      _
    $region35: #{tpu_custom_call.1} parent=1 // pred_check_branch
      %91 = sbr.rel (0) target = $region37
    $region36: #{tpu_custom_call.1} parent=1 // pred_region
      _
    $region37: #{tpu_custom_call.1} parent=1 // pred_fallthru
      _
    // Predicated region
    $region38: #{tpu_custom_call.1} parent=1 // pred_check
      _
    $region39: #{tpu_custom_call.1} parent=1 // pred_check_branch
      %93 = sbr.rel (0) target = $region41
    $region40: #{tpu_custom_call.1} parent=1 // pred_region
      %s95 = ssub.s32 4096, 4096
      %96 = vsyncadd [#allocation12], %s95
      %s97 = sshll.u32 [#allocation11], 4
      %s98 = int_to_ptr.vmem [resolvable:$true] %s97
      %103 = dma.hbm_to_vmem [thread:$0]  %s9, 4096, %s98, [#allocation12], 128, 128, 8
    $region41: #{tpu_custom_call.1} parent=1 // pred_fallthru
      _
    // Predicated region
    $region42: #{tpu_custom_call.1} parent=1 // pred_check
      _
    $region43: #{tpu_custom_call.1} parent=1 // pred_check_branch
      %105 = sbr.rel (0) target = $region45
    $region44: #{tpu_custom_call.1} parent=1 // pred_region
      _
    $region45: #{tpu_custom_call.1} parent=1 // pred_fallthru
      _
    // Predicated region
    $region46: #{tpu_custom_call.1} parent=1 // pred_check
      _
    $region47: #{tpu_custom_call.1} parent=1 // pred_check_branch
      %107 = sbr.rel (0) target = $region49
    $region48: #{tpu_custom_call.1} parent=1 // pred_region
      %108 = dma.done [#allocation3], 256
    $region49: #{tpu_custom_call.1} parent=1 // pred_fallthru
      _
    // Predicated region
    $region50: #{tpu_custom_call.1} parent=1 // pred_check
      _
    $region51: #{tpu_custom_call.1} parent=1 // pred_check_branch
      %110 = sbr.rel (0) target = $region53
    $region52: #{tpu_custom_call.1} parent=1 // pred_region
      %111 = dma.done [#allocation6], 4096
    $region53: #{tpu_custom_call.1} parent=1 // pred_fallthru
      _
    // Predicated region
    $region54: #{tpu_custom_call.1} parent=1 // pred_check
      _
    $region55: #{tpu_custom_call.1} parent=1 // pred_check_branch
      %113 = sbr.rel (0) target = $region57
    $region56: #{tpu_custom_call.1} parent=1 // pred_region
      %114 = dma.done [#allocation6], 4096
    $region57: #{tpu_custom_call.1} parent=1 // pred_fallthru
      _
    // Predicated region
    $region58: #{tpu_custom_call.1} parent=1 // pred_check
      _
    $region59: #{tpu_custom_call.1} parent=1 // pred_check_branch
      %116 = sbr.rel (0) target = $region61
    $region60: #{tpu_custom_call.1} parent=1 // pred_region
      %117 = dma.done [#allocation9], 4096
    $region61: #{tpu_custom_call.1} parent=1 // pred_fallthru
      _
    // Predicated region
    $region62: #{tpu_custom_call.1} parent=1 // pred_check
      _
    $region63: #{tpu_custom_call.1} parent=1 // pred_check_branch
      %119 = sbr.rel (0) target = $region65
    $region64: #{tpu_custom_call.1} parent=1 // pred_region
      %120 = dma.done [#allocation9], 4096
    $region65: #{tpu_custom_call.1} parent=1 // pred_fallthru
      _
    // Predicated region
    $region66: #{tpu_custom_call.1} parent=1 // pred_check
      _
    $region67: #{tpu_custom_call.1} parent=1 // pred_check_branch
      %122 = sbr.rel (0) target = $region69
    $region68: #{tpu_custom_call.1} parent=1 // pred_region
      %123 = dma.done [#allocation12], 4096
    $region69: #{tpu_custom_call.1} parent=1 // pred_fallthru
      _
    %v124 = vld [vmem:[#allocation2] sm:$0xff]
    %v125 = vld [vmem:[#allocation2 + $0x8] sm:$0xff]
    %v126 = vld [vmem:[#allocation5] sm:$0xff]
    %v127 = vld [vmem:[#allocation5 + $0x8] sm:$0xff]
    %v128 = vld [vmem:[#allocation5 + $0x10] sm:$0xff]
    %v129 = vld [vmem:[#allocation5 + $0x18] sm:$0xff]
    %v130 = vld [vmem:[#allocation5 + $0x20] sm:$0xff]
    %v131 = vld [vmem:[#allocation5 + $0x28] sm:$0xff]
    %v132 = vld [vmem:[#allocation5 + $0x30] sm:$0xff]
    %v133 = vld [vmem:[#allocation5 + $0x38] sm:$0xff]
    %v134 = vld [vmem:[#allocation5 + $0x40] sm:$0xff]
    %v135 = vld [vmem:[#allocation5 + $0x48] sm:$0xff]
    %v136 = vld [vmem:[#allocation5 + $0x50] sm:$0xff]
    %v137 = vld [vmem:[#allocation5 + $0x58] sm:$0xff]
    %v138 = vld [vmem:[#allocation5 + $0x60] sm:$0xff]
    %v139 = vld [vmem:[#allocation5 + $0x68] sm:$0xff]
    %v140 = vld [vmem:[#allocation5 + $0x70] sm:$0xff]
    %v141 = vld [vmem:[#allocation5 + $0x78] sm:$0xff]
    %v142 = vld [vmem:[#allocation5 + $0x80] sm:$0xff]
    %v143 = vld [vmem:[#allocation5 + $0x88] sm:$0xff]
    %v144 = vld [vmem:[#allocation5 + $0x90] sm:$0xff]
    %v145 = vld [vmem:[#allocation5 + $0x98] sm:$0xff]
    %v146 = vld [vmem:[#allocation5 + $0xa0] sm:$0xff]
    %v147 = vld [vmem:[#allocation5 + $0xa8] sm:$0xff]
    %v148 = vld [vmem:[#allocation5 + $0xb0] sm:$0xff]
    %v149 = vld [vmem:[#allocation5 + $0xb8] sm:$0xff]
    %v150 = vld [vmem:[#allocation5 + $0xc0] sm:$0xff]
    %v151 = vld [vmem:[#allocation5 + $0xc8] sm:$0xff]
    %v152 = vld [vmem:[#allocation5 + $0xd0] sm:$0xff]
    %v153 = vld [vmem:[#allocation5 + $0xd8] sm:$0xff]
    %v154 = vld [vmem:[#allocation5 + $0xe0] sm:$0xff]
    %v155 = vld [vmem:[#allocation5 + $0xe8] sm:$0xff]
    %v156 = vld [vmem:[#allocation5 + $0xf0] sm:$0xff]
    %v157 = vld [vmem:[#allocation5 + $0xf8] sm:$0xff]
    %v158 = vld [vmem:[%s2] sm:$0x3]
    %v160 = vlaneseq
    %v161 = vshrl.u32 %v160, 7
    %v162 = vsub.s32 0, %v161
    %v163 = vrot.slane %v158, %v162
    %v164 = vlaneseq
    %v165 = vshrl.u32 %v164, 7
    %v166 = vsub.s32 1, %v165
    %v167 = vrot.slane %v158, %v166
    %v172 = vunpack.c.l.b16 %v124
    %v173 = vunpack.c.h.b16 %v124
    %v174 = vunpack.c.l.b16 %v125
    %v175 = vunpack.c.h.b16 %v125
    %v176 = vpack.c.b16 %v174, %v172
    %v177 = vpack.c.b16 %v175, %v173
    %v212 = vunpack.c.l.b16 %v126
    %v213 = vunpack.c.h.b16 %v126
    %v214 = vunpack.c.l.b16 %v127
    %v215 = vunpack.c.h.b16 %v127
    %v216 = vunpack.c.l.b16 %v128
    %v217 = vunpack.c.h.b16 %v128
    %v218 = vunpack.c.l.b16 %v129
    %v219 = vunpack.c.h.b16 %v129
    %v220 = vunpack.c.l.b16 %v130
    %v221 = vunpack.c.h.b16 %v130
    %v222 = vunpack.c.l.b16 %v131
    %v223 = vunpack.c.h.b16 %v131
    %v224 = vunpack.c.l.b16 %v132
    %v225 = vunpack.c.h.b16 %v132
    %v226 = vunpack.c.l.b16 %v133
    %v227 = vunpack.c.h.b16 %v133
    %v228 = vunpack.c.l.b16 %v134
    %v229 = vunpack.c.h.b16 %v134
    %v230 = vunpack.c.l.b16 %v135
    %v231 = vunpack.c.h.b16 %v135
    %v232 = vunpack.c.l.b16 %v136
    %v233 = vunpack.c.h.b16 %v136
    %v234 = vunpack.c.l.b16 %v137
    %v235 = vunpack.c.h.b16 %v137
    %v236 = vunpack.c.l.b16 %v138
    %v237 = vunpack.c.h.b16 %v138
    %v238 = vunpack.c.l.b16 %v139
    %v239 = vunpack.c.h.b16 %v139
    %v240 = vunpack.c.l.b16 %v140
    %v241 = vunpack.c.h.b16 %v140
    %v242 = vunpack.c.l.b16 %v141
    %v243 = vunpack.c.h.b16 %v141
    %v244 = vunpack.c.l.b16 %v142
    %v245 = vunpack.c.h.b16 %v142
    %v246 = vunpack.c.l.b16 %v143
    %v247 = vunpack.c.h.b16 %v143
    %v248 = vunpack.c.l.b16 %v144
    %v249 = vunpack.c.h.b16 %v144
    %v250 = vunpack.c.l.b16 %v145
    %v251 = vunpack.c.h.b16 %v145
    %v252 = vunpack.c.l.b16 %v146
    %v253 = vunpack.c.h.b16 %v146
    %v254 = vunpack.c.l.b16 %v147
    %v255 = vunpack.c.h.b16 %v147
    %v256 = vunpack.c.l.b16 %v148
    %v257 = vunpack.c.h.b16 %v148
    %v258 = vunpack.c.l.b16 %v149
    %v259 = vunpack.c.h.b16 %v149
    %v260 = vunpack.c.l.b16 %v150
    %v261 = vunpack.c.h.b16 %v150
    %v262 = vunpack.c.l.b16 %v151
    %v263 = vunpack.c.h.b16 %v151
    %v264 = vunpack.c.l.b16 %v152
    %v265 = vunpack.c.h.b16 %v152
    %v266 = vunpack.c.l.b16 %v153
    %v267 = vunpack.c.h.b16 %v153
    %v268 = vunpack.c.l.b16 %v154
    %v269 = vunpack.c.h.b16 %v154
    %v270 = vunpack.c.l.b16 %v155
    %v271 = vunpack.c.h.b16 %v155
    %v272 = vunpack.c.l.b16 %v156
    %v273 = vunpack.c.h.b16 %v156
    %v274 = vunpack.c.l.b16 %v157
    %v275 = vunpack.c.h.b16 %v157
    %v276 = vpack.c.b16 %v214, %v212
    %v277 = vpack.c.b16 %v215, %v213
    %v278 = vpack.c.b16 %v218, %v216
    %v279 = vpack.c.b16 %v219, %v217
    %v280 = vpack.c.b16 %v222, %v220
    %v281 = vpack.c.b16 %v223, %v221
    %v282 = vpack.c.b16 %v226, %v224
    %v283 = vpack.c.b16 %v227, %v225
    %v284 = vpack.c.b16 %v230, %v228
    %v285 = vpack.c.b16 %v231, %v229
    %v286 = vpack.c.b16 %v234, %v232
    %v287 = vpack.c.b16 %v235, %v233
    %v288 = vpack.c.b16 %v238, %v236
    %v289 = vpack.c.b16 %v239, %v237
    %v290 = vpack.c.b16 %v242, %v240
    %v291 = vpack.c.b16 %v243, %v241
    %v292 = vpack.c.b16 %v246, %v244
    %v293 = vpack.c.b16 %v247, %v245
    %v294 = vpack.c.b16 %v250, %v248
    %v295 = vpack.c.b16 %v251, %v249
    %v296 = vpack.c.b16 %v254, %v252
    %v297 = vpack.c.b16 %v255, %v253
    %v298 = vpack.c.b16 %v258, %v256
    %v299 = vpack.c.b16 %v259, %v257
    %v300 = vpack.c.b16 %v262, %v260
    %v301 = vpack.c.b16 %v263, %v261
    %v302 = vpack.c.b16 %v266, %v264
    %v303 = vpack.c.b16 %v267, %v265
    %v304 = vpack.c.b16 %v270, %v268
    %v305 = vpack.c.b16 %v271, %v269
    %v306 = vpack.c.b16 %v274, %v272
    %v307 = vpack.c.b16 %v275, %v273
    %340 = vmatprep.subr.bf16.mxu0 %v277
    %341 = vmatpush1.bf16.msra.mxu0 %v276
    %342 = vmatprep.subr.bf16.mxu0 %v279
    %343 = vmatpush1.bf16.msra.mxu0 %v278
    %344 = vmatprep.subr.bf16.mxu0 %v281
    %345 = vmatpush1.bf16.msra.mxu0 %v280
    %346 = vmatprep.subr.bf16.mxu0 %v283
    %347 = vmatpush1.bf16.msra.mxu0 %v282
    %348 = vmatprep.subr.bf16.mxu0 %v285
    %349 = vmatpush1.bf16.msra.mxu0 %v284
    %350 = vmatprep.subr.bf16.mxu0 %v287
    %351 = vmatpush1.bf16.msra.mxu0 %v286
    %352 = vmatprep.subr.bf16.mxu0 %v289
    %353 = vmatpush1.bf16.msra.mxu0 %v288
    %354 = vmatprep.subr.bf16.mxu0 %v291
    %355 = vmatpush1.bf16.msra.mxu0 %v290
    %356 = vmatprep.subr.bf16.mxu0 %v293
    %357 = vmatpush1.bf16.msra.mxu0 %v292
    %358 = vmatprep.subr.bf16.mxu0 %v295
    %359 = vmatpush1.bf16.msra.mxu0 %v294
    %360 = vmatprep.subr.bf16.mxu0 %v297
    %361 = vmatpush1.bf16.msra.mxu0 %v296
    %362 = vmatprep.subr.bf16.mxu0 %v299
    %363 = vmatpush1.bf16.msra.mxu0 %v298
    %364 = vmatprep.subr.bf16.mxu0 %v301
    %365 = vmatpush1.bf16.msra.mxu0 %v300
    %366 = vmatprep.subr.bf16.mxu0 %v303
    %367 = vmatpush1.bf16.msra.mxu0 %v302
    %368 = vmatprep.subr.bf16.mxu0 %v305
    %369 = vmatpush1.bf16.msra.mxu0 %v304
    %370 = vmatprep.subr.bf16.mxu0 %v307
    %371 = vmatpush1.bf16.msra.mxu0 %v306
    %372 = vmatprep.mubr.bf16.mxu0 %v177
    %373 = vmatmul.mubr.bf16.gmra.mrb[0].mxu0 %v176
    %v374 = vpop.f32.mrb[0].mxu0
    %v375 = vadd.f32 %v163, %v374
    %v376 = vpop.f32.mrb[0].mxu0
    %v377 = vadd.f32 %v167, %v376
    %v378 = vpop.f32.mrb[0].mxu0
    %v379 = vadd.f32 %v163, %v378
    %v380 = vpop.f32.mrb[0].mxu0
    %v381 = vadd.f32 %v167, %v380
    %382 = vdwg.mxu0
    %v383 = vmul.f32 %v375, 0.2
    %v384 = vmul.f32 %v377, 0.2
    %v385 = vmul.f32 %v379, 0.2
    %v386 = vmul.f32 %v381, 0.2
    %v387 = vmax.f32 %v375, %v383
    %v388 = vmax.f32 %v377, %v384
    %v389 = vmax.f32 %v379, %v385
    %v390 = vmax.f32 %v381, %v386
    %v391 = vpack.c.bf16 %v389, %v387
    %v392 = vpack.c.bf16 %v390, %v388
    %v393 = vld [vmem:[#allocation7] sm:$0xff]
    %v394 = vld [vmem:[#allocation7 + $0x8] sm:$0xff]
    %v395 = vld [vmem:[#allocation7 + $0x10] sm:$0xff]
    %v396 = vld [vmem:[#allocation7 + $0x18] sm:$0xff]
    %v397 = vld [vmem:[#allocation7 + $0x20] sm:$0xff]
    %v398 = vld [vmem:[#allocation7 + $0x28] sm:$0xff]
    %v399 = vld [vmem:[#allocation7 + $0x30] sm:$0xff]
    %v400 = vld [vmem:[#allocation7 + $0x38] sm:$0xff]
    %v401 = vld [vmem:[#allocation7 + $0x40] sm:$0xff]
    %v402 = vld [vmem:[#allocation7 + $0x48] sm:$0xff]
    %v403 = vld [vmem:[#allocation7 + $0x50] sm:$0xff]
    %v404 = vld [vmem:[#allocation7 + $0x58] sm:$0xff]
    %v405 = vld [vmem:[#allocation7 + $0x60] sm:$0xff]
    %v406 = vld [vmem:[#allocation7 + $0x68] sm:$0xff]
    %v407 = vld [vmem:[#allocation7 + $0x70] sm:$0xff]
    %v408 = vld [vmem:[#allocation7 + $0x78] sm:$0xff]
    %v409 = vld [vmem:[#allocation7 + $0x80] sm:$0xff]
    %v410 = vld [vmem:[#allocation7 + $0x88] sm:$0xff]
    %v411 = vld [vmem:[#allocation7 + $0x90] sm:$0xff]
    %v412 = vld [vmem:[#allocation7 + $0x98] sm:$0xff]
    %v413 = vld [vmem:[#allocation7 + $0xa0] sm:$0xff]
    %v414 = vld [vmem:[#allocation7 + $0xa8] sm:$0xff]
    %v415 = vld [vmem:[#allocation7 + $0xb0] sm:$0xff]
    %v416 = vld [vmem:[#allocation7 + $0xb8] sm:$0xff]
    %v417 = vld [vmem:[#allocation7 + $0xc0] sm:$0xff]
    %v418 = vld [vmem:[#allocation7 + $0xc8] sm:$0xff]
    %v419 = vld [vmem:[#allocation7 + $0xd0] sm:$0xff]
    %v420 = vld [vmem:[#allocation7 + $0xd8] sm:$0xff]
    %v421 = vld [vmem:[#allocation7 + $0xe0] sm:$0xff]
    %v422 = vld [vmem:[#allocation7 + $0xe8] sm:$0xff]
    %v423 = vld [vmem:[#allocation7 + $0xf0] sm:$0xff]
    %v424 = vld [vmem:[#allocation7 + $0xf8] sm:$0xff]
    %v425 = vld [vmem:[%s4] sm:$0x3]
    %v427 = vlaneseq
    %v428 = vshrl.u32 %v427, 7
    %v429 = vsub.s32 0, %v428
    %v430 = vrot.slane %v425, %v429
    %v431 = vlaneseq
    %v432 = vshrl.u32 %v431, 7
    %v433 = vsub.s32 1, %v432
    %v434 = vrot.slane %v425, %v433
    %v469 = vunpack.c.l.b16 %v393
    %v470 = vunpack.c.h.b16 %v393
    %v471 = vunpack.c.l.b16 %v394
    %v472 = vunpack.c.h.b16 %v394
    %v473 = vunpack.c.l.b16 %v395
    %v474 = vunpack.c.h.b16 %v395
    %v475 = vunpack.c.l.b16 %v396
    %v476 = vunpack.c.h.b16 %v396
    %v477 = vunpack.c.l.b16 %v397
    %v478 = vunpack.c.h.b16 %v397
    %v479 = vunpack.c.l.b16 %v398
    %v480 = vunpack.c.h.b16 %v398
    %v481 = vunpack.c.l.b16 %v399
    %v482 = vunpack.c.h.b16 %v399
    %v483 = vunpack.c.l.b16 %v400
    %v484 = vunpack.c.h.b16 %v400
    %v485 = vunpack.c.l.b16 %v401
    %v486 = vunpack.c.h.b16 %v401
    %v487 = vunpack.c.l.b16 %v402
    %v488 = vunpack.c.h.b16 %v402
    %v489 = vunpack.c.l.b16 %v403
    %v490 = vunpack.c.h.b16 %v403
    %v491 = vunpack.c.l.b16 %v404
    %v492 = vunpack.c.h.b16 %v404
    %v493 = vunpack.c.l.b16 %v405
    %v494 = vunpack.c.h.b16 %v405
    %v495 = vunpack.c.l.b16 %v406
    %v496 = vunpack.c.h.b16 %v406
    %v497 = vunpack.c.l.b16 %v407
    %v498 = vunpack.c.h.b16 %v407
    %v499 = vunpack.c.l.b16 %v408
    %v500 = vunpack.c.h.b16 %v408
    %v501 = vunpack.c.l.b16 %v409
    %v502 = vunpack.c.h.b16 %v409
    %v503 = vunpack.c.l.b16 %v410
    %v504 = vunpack.c.h.b16 %v410
    %v505 = vunpack.c.l.b16 %v411
    %v506 = vunpack.c.h.b16 %v411
    %v507 = vunpack.c.l.b16 %v412
    %v508 = vunpack.c.h.b16 %v412
    %v509 = vunpack.c.l.b16 %v413
    %v510 = vunpack.c.h.b16 %v413
    %v511 = vunpack.c.l.b16 %v414
    %v512 = vunpack.c.h.b16 %v414
    %v513 = vunpack.c.l.b16 %v415
    %v514 = vunpack.c.h.b16 %v415
    %v515 = vunpack.c.l.b16 %v416
    %v516 = vunpack.c.h.b16 %v416
    %v517 = vunpack.c.l.b16 %v417
    %v518 = vunpack.c.h.b16 %v417
    %v519 = vunpack.c.l.b16 %v418
    %v520 = vunpack.c.h.b16 %v418
    %v521 = vunpack.c.l.b16 %v419
    %v522 = vunpack.c.h.b16 %v419
    %v523 = vunpack.c.l.b16 %v420
    %v524 = vunpack.c.h.b16 %v420
    %v525 = vunpack.c.l.b16 %v421
    %v526 = vunpack.c.h.b16 %v421
    %v527 = vunpack.c.l.b16 %v422
    %v528 = vunpack.c.h.b16 %v422
    %v529 = vunpack.c.l.b16 %v423
    %v530 = vunpack.c.h.b16 %v423
    %v531 = vunpack.c.l.b16 %v424
    %v532 = vunpack.c.h.b16 %v424
    %v533 = vpack.c.b16 %v471, %v469
    %v534 = vpack.c.b16 %v472, %v470
    %v535 = vpack.c.b16 %v475, %v473
    %v536 = vpack.c.b16 %v476, %v474
    %v537 = vpack.c.b16 %v479, %v477
    %v538 = vpack.c.b16 %v480, %v478
    %v539 = vpack.c.b16 %v483, %v481
    %v540 = vpack.c.b16 %v484, %v482
    %v541 = vpack.c.b16 %v487, %v485
    %v542 = vpack.c.b16 %v488, %v486
    %v543 = vpack.c.b16 %v491, %v489
    %v544 = vpack.c.b16 %v492, %v490
    %v545 = vpack.c.b16 %v495, %v493
    %v546 = vpack.c.b16 %v496, %v494
    %v547 = vpack.c.b16 %v499, %v497
    %v548 = vpack.c.b16 %v500, %v498
    %v549 = vpack.c.b16 %v503, %v501
    %v550 = vpack.c.b16 %v504, %v502
    %v551 = vpack.c.b16 %v507, %v505
    %v552 = vpack.c.b16 %v508, %v506
    %v553 = vpack.c.b16 %v511, %v509
    %v554 = vpack.c.b16 %v512, %v510
    %v555 = vpack.c.b16 %v515, %v513
    %v556 = vpack.c.b16 %v516, %v514
    %v557 = vpack.c.b16 %v519, %v517
    %v558 = vpack.c.b16 %v520, %v518
    %v559 = vpack.c.b16 %v523, %v521
    %v560 = vpack.c.b16 %v524, %v522
    %v561 = vpack.c.b16 %v527, %v525
    %v562 = vpack.c.b16 %v528, %v526
    %v563 = vpack.c.b16 %v531, %v529
    %v564 = vpack.c.b16 %v532, %v530
    %597 = vmatprep.subr.bf16.mxu0 %v534
    %598 = vmatpush1.bf16.msra.mxu0 %v533
    %599 = vmatprep.subr.bf16.mxu0 %v536
    %600 = vmatpush1.bf16.msra.mxu0 %v535
    %601 = vmatprep.subr.bf16.mxu0 %v538
    %602 = vmatpush1.bf16.msra.mxu0 %v537
    %603 = vmatprep.subr.bf16.mxu0 %v540
    %604 = vmatpush1.bf16.msra.mxu0 %v539
    %605 = vmatprep.subr.bf16.mxu0 %v542
    %606 = vmatpush1.bf16.msra.mxu0 %v541
    %607 = vmatprep.subr.bf16.mxu0 %v544
    %608 = vmatpush1.bf16.msra.mxu0 %v543
    %609 = vmatprep.subr.bf16.mxu0 %v546
    %610 = vmatpush1.bf16.msra.mxu0 %v545
    %611 = vmatprep.subr.bf16.mxu0 %v548
    %612 = vmatpush1.bf16.msra.mxu0 %v547
    %613 = vmatprep.subr.bf16.mxu0 %v550
    %614 = vmatpush1.bf16.msra.mxu0 %v549
    %615 = vmatprep.subr.bf16.mxu0 %v552
    %616 = vmatpush1.bf16.msra.mxu0 %v551
    %617 = vmatprep.subr.bf16.mxu0 %v554
    %618 = vmatpush1.bf16.msra.mxu0 %v553
    %619 = vmatprep.subr.bf16.mxu0 %v556
    %620 = vmatpush1.bf16.msra.mxu0 %v555
    %621 = vmatprep.subr.bf16.mxu0 %v558
    %622 = vmatpush1.bf16.msra.mxu0 %v557
    %623 = vmatprep.subr.bf16.mxu0 %v560
    %624 = vmatpush1.bf16.msra.mxu0 %v559
    %625 = vmatprep.subr.bf16.mxu0 %v562
    %626 = vmatpush1.bf16.msra.mxu0 %v561
    %627 = vmatprep.subr.bf16.mxu0 %v564
    %628 = vmatpush1.bf16.msra.mxu0 %v563
    %629 = vmatprep.mubr.bf16.mxu0 %v392
    %630 = vmatmul.mubr.bf16.gmra.mrb[0].mxu0 %v391
    %v631 = vpop.f32.mrb[0].mxu0
    %v632 = vadd.f32 %v430, %v631
    %v633 = vpop.f32.mrb[0].mxu0
    %v634 = vadd.f32 %v434, %v633
    %v635 = vpop.f32.mrb[0].mxu0
    %v636 = vadd.f32 %v430, %v635
    %v637 = vpop.f32.mrb[0].mxu0
    %v638 = vadd.f32 %v434, %v637
    %639 = vdwg.mxu0
    %v640 = vmul.f32 %v632, 0.2
    %v641 = vmul.f32 %v634, 0.2
    %v642 = vmul.f32 %v636, 0.2
    %v643 = vmul.f32 %v638, 0.2
    %v644 = vmax.f32 %v632, %v640
    %v645 = vmax.f32 %v634, %v641
    %v646 = vmax.f32 %v636, %v642
    %v647 = vmax.f32 %v638, %v643
    %v648 = vpack.c.bf16 %v646, %v644
    %v649 = vpack.c.bf16 %v647, %v645
    %v650 = vld [vmem:[#allocation8] sm:$0xff]
    %v651 = vld [vmem:[#allocation8 + $0x8] sm:$0xff]
    %v652 = vld [vmem:[#allocation8 + $0x10] sm:$0xff]
    %v653 = vld [vmem:[#allocation8 + $0x18] sm:$0xff]
    %v654 = vld [vmem:[#allocation8 + $0x20] sm:$0xff]
    %v655 = vld [vmem:[#allocation8 + $0x28] sm:$0xff]
    %v656 = vld [vmem:[#allocation8 + $0x30] sm:$0xff]
    %v657 = vld [vmem:[#allocation8 + $0x38] sm:$0xff]
    %v658 = vld [vmem:[#allocation8 + $0x40] sm:$0xff]
    %v659 = vld [vmem:[#allocation8 + $0x48] sm:$0xff]
    %v660 = vld [vmem:[#allocation8 + $0x50] sm:$0xff]
    %v661 = vld [vmem:[#allocation8 + $0x58] sm:$0xff]
    %v662 = vld [vmem:[#allocation8 + $0x60] sm:$0xff]
    %v663 = vld [vmem:[#allocation8 + $0x68] sm:$0xff]
    %v664 = vld [vmem:[#allocation8 + $0x70] sm:$0xff]
    %v665 = vld [vmem:[#allocation8 + $0x78] sm:$0xff]
    %v666 = vld [vmem:[#allocation8 + $0x80] sm:$0xff]
    %v667 = vld [vmem:[#allocation8 + $0x88] sm:$0xff]
    %v668 = vld [vmem:[#allocation8 + $0x90] sm:$0xff]
    %v669 = vld [vmem:[#allocation8 + $0x98] sm:$0xff]
    %v670 = vld [vmem:[#allocation8 + $0xa0] sm:$0xff]
    %v671 = vld [vmem:[#allocation8 + $0xa8] sm:$0xff]
    %v672 = vld [vmem:[#allocation8 + $0xb0] sm:$0xff]
    %v673 = vld [vmem:[#allocation8 + $0xb8] sm:$0xff]
    %v674 = vld [vmem:[#allocation8 + $0xc0] sm:$0xff]
    %v675 = vld [vmem:[#allocation8 + $0xc8] sm:$0xff]
    %v676 = vld [vmem:[#allocation8 + $0xd0] sm:$0xff]
    %v677 = vld [vmem:[#allocation8 + $0xd8] sm:$0xff]
    %v678 = vld [vmem:[#allocation8 + $0xe0] sm:$0xff]
    %v679 = vld [vmem:[#allocation8 + $0xe8] sm:$0xff]
    %v680 = vld [vmem:[#allocation8 + $0xf0] sm:$0xff]
    %v681 = vld [vmem:[#allocation8 + $0xf8] sm:$0xff]
    %v682 = vld [vmem:[%s6] sm:$0x3]
    %v684 = vlaneseq
    %v685 = vshrl.u32 %v684, 7
    %v686 = vsub.s32 0, %v685
    %v687 = vrot.slane %v682, %v686
    %v688 = vlaneseq
    %v689 = vshrl.u32 %v688, 7
    %v690 = vsub.s32 1, %v689
    %v691 = vrot.slane %v682, %v690
    %v726 = vunpack.c.l.b16 %v650
    %v727 = vunpack.c.h.b16 %v650
    %v728 = vunpack.c.l.b16 %v651
    %v729 = vunpack.c.h.b16 %v651
    %v730 = vunpack.c.l.b16 %v652
    %v731 = vunpack.c.h.b16 %v652
    %v732 = vunpack.c.l.b16 %v653
    %v733 = vunpack.c.h.b16 %v653
    %v734 = vunpack.c.l.b16 %v654
    %v735 = vunpack.c.h.b16 %v654
    %v736 = vunpack.c.l.b16 %v655
    %v737 = vunpack.c.h.b16 %v655
    %v738 = vunpack.c.l.b16 %v656
    %v739 = vunpack.c.h.b16 %v656
    %v740 = vunpack.c.l.b16 %v657
    %v741 = vunpack.c.h.b16 %v657
    %v742 = vunpack.c.l.b16 %v658
    %v743 = vunpack.c.h.b16 %v658
    %v744 = vunpack.c.l.b16 %v659
    %v745 = vunpack.c.h.b16 %v659
    %v746 = vunpack.c.l.b16 %v660
    %v747 = vunpack.c.h.b16 %v660
    %v748 = vunpack.c.l.b16 %v661
    %v749 = vunpack.c.h.b16 %v661
    %v750 = vunpack.c.l.b16 %v662
    %v751 = vunpack.c.h.b16 %v662
    %v752 = vunpack.c.l.b16 %v663
    %v753 = vunpack.c.h.b16 %v663
    %v754 = vunpack.c.l.b16 %v664
    %v755 = vunpack.c.h.b16 %v664
    %v756 = vunpack.c.l.b16 %v665
    %v757 = vunpack.c.h.b16 %v665
    %v758 = vunpack.c.l.b16 %v666
    %v759 = vunpack.c.h.b16 %v666
    %v760 = vunpack.c.l.b16 %v667
    %v761 = vunpack.c.h.b16 %v667
    %v762 = vunpack.c.l.b16 %v668
    %v763 = vunpack.c.h.b16 %v668
    %v764 = vunpack.c.l.b16 %v669
    %v765 = vunpack.c.h.b16 %v669
    %v766 = vunpack.c.l.b16 %v670
    %v767 = vunpack.c.h.b16 %v670
    %v768 = vunpack.c.l.b16 %v671
    %v769 = vunpack.c.h.b16 %v671
    %v770 = vunpack.c.l.b16 %v672
    %v771 = vunpack.c.h.b16 %v672
    %v772 = vunpack.c.l.b16 %v673
    %v773 = vunpack.c.h.b16 %v673
    %v774 = vunpack.c.l.b16 %v674
    %v775 = vunpack.c.h.b16 %v674
    %v776 = vunpack.c.l.b16 %v675
    %v777 = vunpack.c.h.b16 %v675
    %v778 = vunpack.c.l.b16 %v676
    %v779 = vunpack.c.h.b16 %v676
    %v780 = vunpack.c.l.b16 %v677
    %v781 = vunpack.c.h.b16 %v677
    %v782 = vunpack.c.l.b16 %v678
    %v783 = vunpack.c.h.b16 %v678
    %v784 = vunpack.c.l.b16 %v679
    %v785 = vunpack.c.h.b16 %v679
    %v786 = vunpack.c.l.b16 %v680
    %v787 = vunpack.c.h.b16 %v680
    %v788 = vunpack.c.l.b16 %v681
    %v789 = vunpack.c.h.b16 %v681
    %v790 = vpack.c.b16 %v728, %v726
    %v791 = vpack.c.b16 %v729, %v727
    %v792 = vpack.c.b16 %v732, %v730
    %v793 = vpack.c.b16 %v733, %v731
    %v794 = vpack.c.b16 %v736, %v734
    %v795 = vpack.c.b16 %v737, %v735
    %v796 = vpack.c.b16 %v740, %v738
    %v797 = vpack.c.b16 %v741, %v739
    %v798 = vpack.c.b16 %v744, %v742
    %v799 = vpack.c.b16 %v745, %v743
    %v800 = vpack.c.b16 %v748, %v746
    %v801 = vpack.c.b16 %v749, %v747
    %v802 = vpack.c.b16 %v752, %v750
    %v803 = vpack.c.b16 %v753, %v751
    %v804 = vpack.c.b16 %v756, %v754
    %v805 = vpack.c.b16 %v757, %v755
    %v806 = vpack.c.b16 %v760, %v758
    %v807 = vpack.c.b16 %v761, %v759
    %v808 = vpack.c.b16 %v764, %v762
    %v809 = vpack.c.b16 %v765, %v763
    %v810 = vpack.c.b16 %v768, %v766
    %v811 = vpack.c.b16 %v769, %v767
    %v812 = vpack.c.b16 %v772, %v770
    %v813 = vpack.c.b16 %v773, %v771
    %v814 = vpack.c.b16 %v776, %v774
    %v815 = vpack.c.b16 %v777, %v775
    %v816 = vpack.c.b16 %v780, %v778
    %v817 = vpack.c.b16 %v781, %v779
    %v818 = vpack.c.b16 %v784, %v782
    %v819 = vpack.c.b16 %v785, %v783
    %v820 = vpack.c.b16 %v788, %v786
    %v821 = vpack.c.b16 %v789, %v787
    %854 = vmatprep.subr.bf16.mxu0 %v791
    %855 = vmatpush1.bf16.msra.mxu0 %v790
    %856 = vmatprep.subr.bf16.mxu0 %v793
    %857 = vmatpush1.bf16.msra.mxu0 %v792
    %858 = vmatprep.subr.bf16.mxu0 %v795
    %859 = vmatpush1.bf16.msra.mxu0 %v794
    %860 = vmatprep.subr.bf16.mxu0 %v797
    %861 = vmatpush1.bf16.msra.mxu0 %v796
    %862 = vmatprep.subr.bf16.mxu0 %v799
    %863 = vmatpush1.bf16.msra.mxu0 %v798
    %864 = vmatprep.subr.bf16.mxu0 %v801
    %865 = vmatpush1.bf16.msra.mxu0 %v800
    %866 = vmatprep.subr.bf16.mxu0 %v803
    %867 = vmatpush1.bf16.msra.mxu0 %v802
    %868 = vmatprep.subr.bf16.mxu0 %v805
    %869 = vmatpush1.bf16.msra.mxu0 %v804
    %870 = vmatprep.subr.bf16.mxu0 %v807
    %871 = vmatpush1.bf16.msra.mxu0 %v806
    %872 = vmatprep.subr.bf16.mxu0 %v809
    %873 = vmatpush1.bf16.msra.mxu0 %v808
    %874 = vmatprep.subr.bf16.mxu0 %v811
    %875 = vmatpush1.bf16.msra.mxu0 %v810
    %876 = vmatprep.subr.bf16.mxu0 %v813
    %877 = vmatpush1.bf16.msra.mxu0 %v812
    %878 = vmatprep.subr.bf16.mxu0 %v815
    %879 = vmatpush1.bf16.msra.mxu0 %v814
    %880 = vmatprep.subr.bf16.mxu0 %v817
    %881 = vmatpush1.bf16.msra.mxu0 %v816
    %882 = vmatprep.subr.bf16.mxu0 %v819
    %883 = vmatpush1.bf16.msra.mxu0 %v818
    %884 = vmatprep.subr.bf16.mxu0 %v821
    %885 = vmatpush1.bf16.msra.mxu0 %v820
    %886 = vmatprep.mubr.bf16.mxu0 %v649
    %887 = vmatmul.mubr.bf16.gmra.mrb[0].mxu0 %v648
    %v888 = vpop.f32.mrb[0].mxu0
    %v889 = vadd.f32 %v687, %v888
    %v890 = vpop.f32.mrb[0].mxu0
    %v891 = vadd.f32 %v691, %v890
    %v892 = vpop.f32.mrb[0].mxu0
    %v893 = vadd.f32 %v687, %v892
    %v894 = vpop.f32.mrb[0].mxu0
    %v895 = vadd.f32 %v691, %v894
    %896 = vdwg.mxu0
    %v897 = vmul.f32 %v889, 0.2
    %v898 = vmul.f32 %v891, 0.2
    %v899 = vmul.f32 %v893, 0.2
    %v900 = vmul.f32 %v895, 0.2
    %v901 = vmax.f32 %v889, %v897
    %v902 = vmax.f32 %v891, %v898
    %v903 = vmax.f32 %v893, %v899
    %v904 = vmax.f32 %v895, %v900
    %v905 = vpack.c.bf16 %v903, %v901
    %v906 = vpack.c.bf16 %v904, %v902
    %v907 = vld [vmem:[#allocation10] sm:$0xff]
    %v908 = vld [vmem:[#allocation10 + $0x8] sm:$0xff]
    %v909 = vld [vmem:[#allocation10 + $0x10] sm:$0xff]
    %v910 = vld [vmem:[#allocation10 + $0x18] sm:$0xff]
    %v911 = vld [vmem:[#allocation10 + $0x20] sm:$0xff]
    %v912 = vld [vmem:[#allocation10 + $0x28] sm:$0xff]
    %v913 = vld [vmem:[#allocation10 + $0x30] sm:$0xff]
    %v914 = vld [vmem:[#allocation10 + $0x38] sm:$0xff]
    %v915 = vld [vmem:[#allocation10 + $0x40] sm:$0xff]
    %v916 = vld [vmem:[#allocation10 + $0x48] sm:$0xff]
    %v917 = vld [vmem:[#allocation10 + $0x50] sm:$0xff]
    %v918 = vld [vmem:[#allocation10 + $0x58] sm:$0xff]
    %v919 = vld [vmem:[#allocation10 + $0x60] sm:$0xff]
    %v920 = vld [vmem:[#allocation10 + $0x68] sm:$0xff]
    %v921 = vld [vmem:[#allocation10 + $0x70] sm:$0xff]
    %v922 = vld [vmem:[#allocation10 + $0x78] sm:$0xff]
    %v923 = vld [vmem:[#allocation10 + $0x80] sm:$0xff]
    %v924 = vld [vmem:[#allocation10 + $0x88] sm:$0xff]
    %v925 = vld [vmem:[#allocation10 + $0x90] sm:$0xff]
    %v926 = vld [vmem:[#allocation10 + $0x98] sm:$0xff]
    %v927 = vld [vmem:[#allocation10 + $0xa0] sm:$0xff]
    %v928 = vld [vmem:[#allocation10 + $0xa8] sm:$0xff]
    %v929 = vld [vmem:[#allocation10 + $0xb0] sm:$0xff]
    %v930 = vld [vmem:[#allocation10 + $0xb8] sm:$0xff]
    %v931 = vld [vmem:[#allocation10 + $0xc0] sm:$0xff]
    %v932 = vld [vmem:[#allocation10 + $0xc8] sm:$0xff]
    %v933 = vld [vmem:[#allocation10 + $0xd0] sm:$0xff]
    %v934 = vld [vmem:[#allocation10 + $0xd8] sm:$0xff]
    %v935 = vld [vmem:[#allocation10 + $0xe0] sm:$0xff]
    %v936 = vld [vmem:[#allocation10 + $0xe8] sm:$0xff]
    %v937 = vld [vmem:[#allocation10 + $0xf0] sm:$0xff]
    %v938 = vld [vmem:[#allocation10 + $0xf8] sm:$0xff]
    %v939 = vld [vmem:[%s8] sm:$0x3]
    %v941 = vlaneseq
    %v942 = vshrl.u32 %v941, 7
    %v943 = vsub.s32 0, %v942
    %v944 = vrot.slane %v939, %v943
    %v945 = vlaneseq
    %v946 = vshrl.u32 %v945, 7
    %v947 = vsub.s32 1, %v946
    %v948 = vrot.slane %v939, %v947
    %v983 = vunpack.c.l.b16 %v907
    %v984 = vunpack.c.h.b16 %v907
    %v985 = vunpack.c.l.b16 %v908
    %v986 = vunpack.c.h.b16 %v908
    %v987 = vunpack.c.l.b16 %v909
    %v988 = vunpack.c.h.b16 %v909
    %v989 = vunpack.c.l.b16 %v910
    %v990 = vunpack.c.h.b16 %v910
    %v991 = vunpack.c.l.b16 %v911
    %v992 = vunpack.c.h.b16 %v911
    %v993 = vunpack.c.l.b16 %v912
    %v994 = vunpack.c.h.b16 %v912
    %v995 = vunpack.c.l.b16 %v913
    %v996 = vunpack.c.h.b16 %v913
    %v997 = vunpack.c.l.b16 %v914
    %v998 = vunpack.c.h.b16 %v914
    %v999 = vunpack.c.l.b16 %v915
    %v1000 = vunpack.c.h.b16 %v915
    %v1001 = vunpack.c.l.b16 %v916
    %v1002 = vunpack.c.h.b16 %v916
    %v1003 = vunpack.c.l.b16 %v917
    %v1004 = vunpack.c.h.b16 %v917
    %v1005 = vunpack.c.l.b16 %v918
    %v1006 = vunpack.c.h.b16 %v918
    %v1007 = vunpack.c.l.b16 %v919
    %v1008 = vunpack.c.h.b16 %v919
    %v1009 = vunpack.c.l.b16 %v920
    %v1010 = vunpack.c.h.b16 %v920
    %v1011 = vunpack.c.l.b16 %v921
    %v1012 = vunpack.c.h.b16 %v921
    %v1013 = vunpack.c.l.b16 %v922
    %v1014 = vunpack.c.h.b16 %v922
    %v1015 = vunpack.c.l.b16 %v923
    %v1016 = vunpack.c.h.b16 %v923
    %v1017 = vunpack.c.l.b16 %v924
    %v1018 = vunpack.c.h.b16 %v924
    %v1019 = vunpack.c.l.b16 %v925
    %v1020 = vunpack.c.h.b16 %v925
    %v1021 = vunpack.c.l.b16 %v926
    %v1022 = vunpack.c.h.b16 %v926
    %v1023 = vunpack.c.l.b16 %v927
    %v1024 = vunpack.c.h.b16 %v927
    %v1025 = vunpack.c.l.b16 %v928
    %v1026 = vunpack.c.h.b16 %v928
    %v1027 = vunpack.c.l.b16 %v929
    %v1028 = vunpack.c.h.b16 %v929
    %v1029 = vunpack.c.l.b16 %v930
    %v1030 = vunpack.c.h.b16 %v930
    %v1031 = vunpack.c.l.b16 %v931
    %v1032 = vunpack.c.h.b16 %v931
    %v1033 = vunpack.c.l.b16 %v932
    %v1034 = vunpack.c.h.b16 %v932
    %v1035 = vunpack.c.l.b16 %v933
    %v1036 = vunpack.c.h.b16 %v933
    %v1037 = vunpack.c.l.b16 %v934
    %v1038 = vunpack.c.h.b16 %v934
    %v1039 = vunpack.c.l.b16 %v935
    %v1040 = vunpack.c.h.b16 %v935
    %v1041 = vunpack.c.l.b16 %v936
    %v1042 = vunpack.c.h.b16 %v936
    %v1043 = vunpack.c.l.b16 %v937
    %v1044 = vunpack.c.h.b16 %v937
    %v1045 = vunpack.c.l.b16 %v938
    %v1046 = vunpack.c.h.b16 %v938
    %v1047 = vpack.c.b16 %v985, %v983
    %v1048 = vpack.c.b16 %v986, %v984
    %v1049 = vpack.c.b16 %v989, %v987
    %v1050 = vpack.c.b16 %v990, %v988
    %v1051 = vpack.c.b16 %v993, %v991
    %v1052 = vpack.c.b16 %v994, %v992
    %v1053 = vpack.c.b16 %v997, %v995
    %v1054 = vpack.c.b16 %v998, %v996
    %v1055 = vpack.c.b16 %v1001, %v999
    %v1056 = vpack.c.b16 %v1002, %v1000
    %v1057 = vpack.c.b16 %v1005, %v1003
    %v1058 = vpack.c.b16 %v1006, %v1004
    %v1059 = vpack.c.b16 %v1009, %v1007
    %v1060 = vpack.c.b16 %v1010, %v1008
    %v1061 = vpack.c.b16 %v1013, %v1011
    %v1062 = vpack.c.b16 %v1014, %v1012
    %v1063 = vpack.c.b16 %v1017, %v1015
    %v1064 = vpack.c.b16 %v1018, %v1016
    %v1065 = vpack.c.b16 %v1021, %v1019
    %v1066 = vpack.c.b16 %v1022, %v1020
    %v1067 = vpack.c.b16 %v1025, %v1023
    %v1068 = vpack.c.b16 %v1026, %v1024
    %v1069 = vpack.c.b16 %v1029, %v1027
    %v1070 = vpack.c.b16 %v1030, %v1028
    %v1071 = vpack.c.b16 %v1033, %v1031
    %v1072 = vpack.c.b16 %v1034, %v1032
    %v1073 = vpack.c.b16 %v1037, %v1035
    %v1074 = vpack.c.b16 %v1038, %v1036
    %v1075 = vpack.c.b16 %v1041, %v1039
    %v1076 = vpack.c.b16 %v1042, %v1040
    %v1077 = vpack.c.b16 %v1045, %v1043
    %v1078 = vpack.c.b16 %v1046, %v1044
    %1111 = vmatprep.subr.bf16.mxu0 %v1048
    %1112 = vmatpush1.bf16.msra.mxu0 %v1047
    %1113 = vmatprep.subr.bf16.mxu0 %v1050
    %1114 = vmatpush1.bf16.msra.mxu0 %v1049
    %1115 = vmatprep.subr.bf16.mxu0 %v1052
    %1116 = vmatpush1.bf16.msra.mxu0 %v1051
    %1117 = vmatprep.subr.bf16.mxu0 %v1054
    %1118 = vmatpush1.bf16.msra.mxu0 %v1053
    %1119 = vmatprep.subr.bf16.mxu0 %v1056
    %1120 = vmatpush1.bf16.msra.mxu0 %v1055
    %1121 = vmatprep.subr.bf16.mxu0 %v1058
    %1122 = vmatpush1.bf16.msra.mxu0 %v1057
    %1123 = vmatprep.subr.bf16.mxu0 %v1060
    %1124 = vmatpush1.bf16.msra.mxu0 %v1059
    %1125 = vmatprep.subr.bf16.mxu0 %v1062
    %1126 = vmatpush1.bf16.msra.mxu0 %v1061
    %1127 = vmatprep.subr.bf16.mxu0 %v1064
    %1128 = vmatpush1.bf16.msra.mxu0 %v1063
    %1129 = vmatprep.subr.bf16.mxu0 %v1066
    %1130 = vmatpush1.bf16.msra.mxu0 %v1065
    %1131 = vmatprep.subr.bf16.mxu0 %v1068
    %1132 = vmatpush1.bf16.msra.mxu0 %v1067
    %1133 = vmatprep.subr.bf16.mxu0 %v1070
    %1134 = vmatpush1.bf16.msra.mxu0 %v1069
    %1135 = vmatprep.subr.bf16.mxu0 %v1072
    %1136 = vmatpush1.bf16.msra.mxu0 %v1071
    %1137 = vmatprep.subr.bf16.mxu0 %v1074
    %1138 = vmatpush1.bf16.msra.mxu0 %v1073
    %1139 = vmatprep.subr.bf16.mxu0 %v1076
    %1140 = vmatpush1.bf16.msra.mxu0 %v1075
    %1141 = vmatprep.subr.bf16.mxu0 %v1078
    %1142 = vmatpush1.bf16.msra.mxu0 %v1077
    %1143 = vmatprep.mubr.bf16.mxu0 %v906
    %1144 = vmatmul.mubr.bf16.gmra.mrb[0].mxu0 %v905
    %v1145 = vpop.f32.mrb[0].mxu0
    %v1146 = vadd.f32 %v944, %v1145
    %v1147 = vpop.f32.mrb[0].mxu0
    %v1148 = vadd.f32 %v948, %v1147
    %v1149 = vpop.f32.mrb[0].mxu0
    %v1150 = vadd.f32 %v944, %v1149
    %v1151 = vpop.f32.mrb[0].mxu0
    %v1152 = vadd.f32 %v948, %v1151
    %1153 = vdwg.mxu0
    %1154 = vst [vmem:[#allocation13] sm:$0xff] %v1146
    %1155 = vst [vmem:[#allocation13 + $0x8] sm:$0xff] %v1148
    %1156 = vst [vmem:[#allocation13 + $0x10] sm:$0xff] %v1150
    %1157 = vst [vmem:[#allocation13 + $0x18] sm:$0xff] %v1152
    %v1158 = vld [vmem:[#allocation11] sm:$0xff]
    %v1159 = vld [vmem:[#allocation11 + $0x8] sm:$0xff]
    %v1160 = vld [vmem:[#allocation11 + $0x10] sm:$0xff]
    %v1161 = vld [vmem:[#allocation11 + $0x18] sm:$0xff]
    %v1162 = vld [vmem:[#allocation11 + $0x20] sm:$0xff]
    %v1163 = vld [vmem:[#allocation11 + $0x28] sm:$0xff]
    %v1164 = vld [vmem:[#allocation11 + $0x30] sm:$0xff]
    %v1165 = vld [vmem:[#allocation11 + $0x38] sm:$0xff]
    %v1166 = vld [vmem:[#allocation11 + $0x40] sm:$0xff]
    %v1167 = vld [vmem:[#allocation11 + $0x48] sm:$0xff]
    %v1168 = vld [vmem:[#allocation11 + $0x50] sm:$0xff]
    %v1169 = vld [vmem:[#allocation11 + $0x58] sm:$0xff]
    %v1170 = vld [vmem:[#allocation11 + $0x60] sm:$0xff]
    %v1171 = vld [vmem:[#allocation11 + $0x68] sm:$0xff]
    %v1172 = vld [vmem:[#allocation11 + $0x70] sm:$0xff]
    %v1173 = vld [vmem:[#allocation11 + $0x78] sm:$0xff]
    %v1174 = vld [vmem:[#allocation11 + $0x80] sm:$0xff]
    %v1175 = vld [vmem:[#allocation11 + $0x88] sm:$0xff]
    %v1176 = vld [vmem:[#allocation11 + $0x90] sm:$0xff]
    %v1177 = vld [vmem:[#allocation11 + $0x98] sm:$0xff]
    %v1178 = vld [vmem:[#allocation11 + $0xa0] sm:$0xff]
    %v1179 = vld [vmem:[#allocation11 + $0xa8] sm:$0xff]
    %v1180 = vld [vmem:[#allocation11 + $0xb0] sm:$0xff]
    %v1181 = vld [vmem:[#allocation11 + $0xb8] sm:$0xff]
    %v1182 = vld [vmem:[#allocation11 + $0xc0] sm:$0xff]
    %v1183 = vld [vmem:[#allocation11 + $0xc8] sm:$0xff]
    %v1184 = vld [vmem:[#allocation11 + $0xd0] sm:$0xff]
    %v1185 = vld [vmem:[#allocation11 + $0xd8] sm:$0xff]
    %v1186 = vld [vmem:[#allocation11 + $0xe0] sm:$0xff]
    %v1187 = vld [vmem:[#allocation11 + $0xe8] sm:$0xff]
    %v1188 = vld [vmem:[#allocation11 + $0xf0] sm:$0xff]
    %v1189 = vld [vmem:[#allocation11 + $0xf8] sm:$0xff]
    %v1190 = vld [vmem:[%s10] sm:$0x3]
    %v1192 = vlaneseq
    %v1193 = vshrl.u32 %v1192, 7
    %v1194 = vsub.s32 0, %v1193
    %v1195 = vrot.slane %v1190, %v1194
    %v1196 = vlaneseq
    %v1197 = vshrl.u32 %v1196, 7
    %v1198 = vsub.s32 1, %v1197
    %v1199 = vrot.slane %v1190, %v1198
    %v1234 = vunpack.c.l.b16 %v1158
    %v1235 = vunpack.c.h.b16 %v1158
    %v1236 = vunpack.c.l.b16 %v1159
    %v1237 = vunpack.c.h.b16 %v1159
    %v1238 = vunpack.c.l.b16 %v1160
    %v1239 = vunpack.c.h.b16 %v1160
    %v1240 = vunpack.c.l.b16 %v1161
    %v1241 = vunpack.c.h.b16 %v1161
    %v1242 = vunpack.c.l.b16 %v1162
    %v1243 = vunpack.c.h.b16 %v1162
    %v1244 = vunpack.c.l.b16 %v1163
    %v1245 = vunpack.c.h.b16 %v1163
    %v1246 = vunpack.c.l.b16 %v1164
    %v1247 = vunpack.c.h.b16 %v1164
    %v1248 = vunpack.c.l.b16 %v1165
    %v1249 = vunpack.c.h.b16 %v1165
    %v1250 = vunpack.c.l.b16 %v1166
    %v1251 = vunpack.c.h.b16 %v1166
    %v1252 = vunpack.c.l.b16 %v1167
    %v1253 = vunpack.c.h.b16 %v1167
    %v1254 = vunpack.c.l.b16 %v1168
    %v1255 = vunpack.c.h.b16 %v1168
    %v1256 = vunpack.c.l.b16 %v1169
    %v1257 = vunpack.c.h.b16 %v1169
    %v1258 = vunpack.c.l.b16 %v1170
    %v1259 = vunpack.c.h.b16 %v1170
    %v1260 = vunpack.c.l.b16 %v1171
    %v1261 = vunpack.c.h.b16 %v1171
    %v1262 = vunpack.c.l.b16 %v1172
    %v1263 = vunpack.c.h.b16 %v1172
    %v1264 = vunpack.c.l.b16 %v1173
    %v1265 = vunpack.c.h.b16 %v1173
    %v1266 = vunpack.c.l.b16 %v1174
    %v1267 = vunpack.c.h.b16 %v1174
    %v1268 = vunpack.c.l.b16 %v1175
    %v1269 = vunpack.c.h.b16 %v1175
    %v1270 = vunpack.c.l.b16 %v1176
    %v1271 = vunpack.c.h.b16 %v1176
    %v1272 = vunpack.c.l.b16 %v1177
    %v1273 = vunpack.c.h.b16 %v1177
    %v1274 = vunpack.c.l.b16 %v1178
    %v1275 = vunpack.c.h.b16 %v1178
    %v1276 = vunpack.c.l.b16 %v1179
    %v1277 = vunpack.c.h.b16 %v1179
    %v1278 = vunpack.c.l.b16 %v1180
    %v1279 = vunpack.c.h.b16 %v1180
    %v1280 = vunpack.c.l.b16 %v1181
    %v1281 = vunpack.c.h.b16 %v1181
    %v1282 = vunpack.c.l.b16 %v1182
    %v1283 = vunpack.c.h.b16 %v1182
    %v1284 = vunpack.c.l.b16 %v1183
    %v1285 = vunpack.c.h.b16 %v1183
    %v1286 = vunpack.c.l.b16 %v1184
    %v1287 = vunpack.c.h.b16 %v1184
    %v1288 = vunpack.c.l.b16 %v1185
    %v1289 = vunpack.c.h.b16 %v1185
    %v1290 = vunpack.c.l.b16 %v1186
    %v1291 = vunpack.c.h.b16 %v1186
    %v1292 = vunpack.c.l.b16 %v1187
    %v1293 = vunpack.c.h.b16 %v1187
    %v1294 = vunpack.c.l.b16 %v1188
    %v1295 = vunpack.c.h.b16 %v1188
    %v1296 = vunpack.c.l.b16 %v1189
    %v1297 = vunpack.c.h.b16 %v1189
    %v1298 = vpack.c.b16 %v1236, %v1234
    %v1299 = vpack.c.b16 %v1237, %v1235
    %v1300 = vpack.c.b16 %v1240, %v1238
    %v1301 = vpack.c.b16 %v1241, %v1239
    %v1302 = vpack.c.b16 %v1244, %v1242
    %v1303 = vpack.c.b16 %v1245, %v1243
    %v1304 = vpack.c.b16 %v1248, %v1246
    %v1305 = vpack.c.b16 %v1249, %v1247
    %v1306 = vpack.c.b16 %v1252, %v1250
    %v1307 = vpack.c.b16 %v1253, %v1251
    %v1308 = vpack.c.b16 %v1256, %v1254
    %v1309 = vpack.c.b16 %v1257, %v1255
    %v1310 = vpack.c.b16 %v1260, %v1258
    %v1311 = vpack.c.b16 %v1261, %v1259
    %v1312 = vpack.c.b16 %v1264, %v1262
    %v1313 = vpack.c.b16 %v1265, %v1263
    %v1314 = vpack.c.b16 %v1268, %v1266
    %v1315 = vpack.c.b16 %v1269, %v1267
    %v1316 = vpack.c.b16 %v1272, %v1270
    %v1317 = vpack.c.b16 %v1273, %v1271
    %v1318 = vpack.c.b16 %v1276, %v1274
    %v1319 = vpack.c.b16 %v1277, %v1275
    %v1320 = vpack.c.b16 %v1280, %v1278
    %v1321 = vpack.c.b16 %v1281, %v1279
    %v1322 = vpack.c.b16 %v1284, %v1282
    %v1323 = vpack.c.b16 %v1285, %v1283
    %v1324 = vpack.c.b16 %v1288, %v1286
    %v1325 = vpack.c.b16 %v1289, %v1287
    %v1326 = vpack.c.b16 %v1292, %v1290
    %v1327 = vpack.c.b16 %v1293, %v1291
    %v1328 = vpack.c.b16 %v1296, %v1294
    %v1329 = vpack.c.b16 %v1297, %v1295
    %1362 = vmatprep.subr.bf16.mxu0 %v1299
    %1363 = vmatpush1.bf16.msra.mxu0 %v1298
    %1364 = vmatprep.subr.bf16.mxu0 %v1301
    %1365 = vmatpush1.bf16.msra.mxu0 %v1300
    %1366 = vmatprep.subr.bf16.mxu0 %v1303
    %1367 = vmatpush1.bf16.msra.mxu0 %v1302
    %1368 = vmatprep.subr.bf16.mxu0 %v1305
    %1369 = vmatpush1.bf16.msra.mxu0 %v1304
    %1370 = vmatprep.subr.bf16.mxu0 %v1307
    %1371 = vmatpush1.bf16.msra.mxu0 %v1306
    %1372 = vmatprep.subr.bf16.mxu0 %v1309
    %1373 = vmatpush1.bf16.msra.mxu0 %v1308
    %1374 = vmatprep.subr.bf16.mxu0 %v1311
    %1375 = vmatpush1.bf16.msra.mxu0 %v1310
    %1376 = vmatprep.subr.bf16.mxu0 %v1313
    %1377 = vmatpush1.bf16.msra.mxu0 %v1312
    %1378 = vmatprep.subr.bf16.mxu0 %v1315
    %1379 = vmatpush1.bf16.msra.mxu0 %v1314
    %1380 = vmatprep.subr.bf16.mxu0 %v1317
    %1381 = vmatpush1.bf16.msra.mxu0 %v1316
    %1382 = vmatprep.subr.bf16.mxu0 %v1319
    %1383 = vmatpush1.bf16.msra.mxu0 %v1318
    %1384 = vmatprep.subr.bf16.mxu0 %v1321
    %1385 = vmatpush1.bf16.msra.mxu0 %v1320
    %1386 = vmatprep.subr.bf16.mxu0 %v1323
    %1387 = vmatpush1.bf16.msra.mxu0 %v1322
    %1388 = vmatprep.subr.bf16.mxu0 %v1325
    %1389 = vmatpush1.bf16.msra.mxu0 %v1324
    %1390 = vmatprep.subr.bf16.mxu0 %v1327
    %1391 = vmatpush1.bf16.msra.mxu0 %v1326
    %1392 = vmatprep.subr.bf16.mxu0 %v1329
    %1393 = vmatpush1.bf16.msra.mxu0 %v1328
    %1394 = vmatprep.mubr.bf16.mxu0 %v906
    %1395 = vmatmul.mubr.bf16.gmra.mrb[0].mxu0 %v905
    %v1396 = vpop.f32.mrb[0].mxu0
    %v1397 = vadd.f32 %v1195, %v1396
    %v1398 = vpop.f32.mrb[0].mxu0
    %v1399 = vadd.f32 %v1199, %v1398
    %v1400 = vpop.f32.mrb[0].mxu0
    %v1401 = vadd.f32 %v1195, %v1400
    %v1402 = vpop.f32.mrb[0].mxu0
    %v1403 = vadd.f32 %v1199, %v1402
    %1404 = vdwg.mxu0
    %1405 = vst [vmem:[#allocation14] sm:$0xff] %v1397
    %1406 = vst [vmem:[#allocation14 + $0x8] sm:$0xff] %v1399
    %1407 = vst [vmem:[#allocation14 + $0x10] sm:$0xff] %v1401
    %1408 = vst [vmem:[#allocation14 + $0x18] sm:$0xff] %v1403
    // Predicated region
    $region70: #{tpu_custom_call.1} parent=1 // pred_check
      _
    $region71: #{tpu_custom_call.1} parent=1 // pred_check_branch
      %1410 = sbr.rel (0) target = $region73
    $region72: #{tpu_custom_call.1} parent=1 // pred_region
      %s1412 = ssub.s32 512, 512
      %1413 = vsyncadd [#allocation4], %s1412
      %s1414 = sshll.u32 [#allocation13], 4
      %s1415 = int_to_ptr.vmem [resolvable:$true] %s1414
      %1420 = dma.vmem_to_hbm [thread:$0]  %s1415, 512, %s11, [#allocation4], 256, 256, 16
    $region73: #{tpu_custom_call.1} parent=1 // pred_fallthru
      _
    // Predicated region
    $region74: #{tpu_custom_call.1} parent=1 // pred_check
      _
    $region75: #{tpu_custom_call.1} parent=1 // pred_check_branch
      %1422 = sbr.rel (0) target = $region77
    $region76: #{tpu_custom_call.1} parent=1 // pred_region
      %s1424 = ssub.s32 512, 512
      %1425 = vsyncadd [#allocation15], %s1424
      %s1426 = sshll.u32 [#allocation14], 4
      %s1427 = int_to_ptr.vmem [resolvable:$true] %s1426
      %1432 = dma.vmem_to_hbm [thread:$0]  %s1427, 512, %s12, [#allocation15], 256, 256, 16
    $region77: #{tpu_custom_call.1} parent=1 // pred_fallthru
      _
    // Predicated region
    $region78: #{tpu_custom_call.1} parent=1 // pred_check
      _
    $region79: #{tpu_custom_call.1} parent=1 // pred_check_branch
      %1434 = sbr.rel (0) target = $region81
    $region80: #{tpu_custom_call.1} parent=1 // pred_region
      %1435 = dma.done [#allocation4], 512
    $region81: #{tpu_custom_call.1} parent=1 // pred_fallthru
      _
    // Predicated region
    $region82: #{tpu_custom_call.1} parent=1 // pred_check
      _
    $region83: #{tpu_custom_call.1} parent=1 // pred_check_branch
      %1437 = sbr.rel (0) target = $region85
    $region84: #{tpu_custom_call.1} parent=1 // pred_region
      %1438 = dma.done [#allocation15], 512
    $region85: #{tpu_custom_call.1} parent=1 // pred_fallthru
      _
    %1439 = vsyncpa [#allocation3], 1
    %1440 = vsyncpa [#allocation6], 1
    %1441 = vsyncpa [#allocation9], 1
    %1442 = vsyncpa [#allocation12], 1
    %1443 = vsyncpa [#allocation4], 1
    %1444 = vsyncpa [#allocation15], 1

</llo_original>
